<compile_context>
chip_gen: v7x
topology: tpu7x:2x2x1
jax: 0.10.0
libtpu: 0.0.40
codegen_flags: <defaults>
</compile_context>

<pallas_src>
import functools

import jax
import jax.numpy as jnp
from jax.experimental import pallas as pl
from jax.experimental.pallas import tpu as pltpu


# ----------------------------------------------------------------------------
# Fused, tiled loss kernel.
# Grid: (row_tiles, class_tiles); class axis is the innermost reduction.
# ----------------------------------------------------------------------------
def _fused_loss_kernel(w_ref, cc_ref,            # MSE #1 (l_cc)
                       logits_ref, lbl_ref,      # CE (l_adv); labels (TB, 1) i32
                       rec_ref, comp_ref,        # MSE #2 (l_rec)
                       sp_ref, spl_ref,          # MSE #3 (l_sp)
                       cons_ref,                 # SMEM (1, 1) consistency scalar
                       out_ref,                  # SMEM (1, 6) outputs
                       acc_ref,                  # SMEM (4,)  partial sums
                       m_ref, l_ref, pk_ref,     # VMEM (TB,1) online-lse state
                       *, modes, tile_c,
                       inv_cc, inv_rec, inv_sp, inv_adv,
                       alpha, beta, sigma, delta):
    i = pl.program_id(0)          # batch row tile
    j = pl.program_id(1)          # class tile (innermost)
    ni = pl.num_programs(0)
    nj = pl.num_programs(1)

    # ---- init scalar accumulators once ------------------------------------
    @pl.when(jnp.logical_and(i == 0, j == 0))
    def _():
        acc_ref[0] = jnp.float32(0.0)
        acc_ref[1] = jnp.float32(0.0)
        acc_ref[2] = jnp.float32(0.0)
        acc_ref[3] = jnp.float32(0.0)

    # ---- MSE partial sums (blocks are pinned across the class axis) -------
    def _sq_sum(a_ref, b_ref, mode):
        if mode == "diff":
            d = a_ref[...].astype(jnp.float32) - b_ref[...].astype(jnp.float32)
            return jnp.sum(d * d)
        if mode == "sq_a":                     # other operand is implicitly 0
            a = a_ref[...].astype(jnp.float32)
            return jnp.sum(a * a)
        if mode == "sq_b":
            b = b_ref[...].astype(jnp.float32)
            return jnp.sum(b * b)
        return None                            # "zero": skipped statically

    @pl.when(j == 0)
    def _():
        if modes[0] != "zero":
            acc_ref[0] = acc_ref[0] + _sq_sum(w_ref, cc_ref, modes[0])
        if modes[1] != "zero":
            acc_ref[1] = acc_ref[1] + _sq_sum(rec_ref, comp_ref, modes[1])
        if modes[2] != "zero":
            acc_ref[2] = acc_ref[2] + _sq_sum(sp_ref, spl_ref, modes[2])

    # ---- CE: online logsumexp over class tiles, no one-hot ----------------
    @pl.when(j == 0)
    def _():
        m_ref[...] = jnp.full_like(m_ref, -jnp.inf)
        l_ref[...] = jnp.zeros_like(l_ref)
        pk_ref[...] = jnp.zeros_like(pk_ref)

    x = logits_ref[...].astype(jnp.float32)                       # (TB, TC)
    ids = jax.lax.broadcasted_iota(jnp.int32, x.shape, 1) + j * tile_c
    # Fused sweep: picked-logit mask and exp(x - m) share the same tile load.
    pk_ref[...] = pk_ref[...] + jnp.sum(
        jnp.where(ids == lbl_ref[...], x, 0.0), axis=-1, keepdims=True)
    m_prev = m_ref[...]
    m_new = jnp.maximum(m_prev, jnp.max(x, axis=-1, keepdims=True))
    l_ref[...] = (l_ref[...] * jnp.exp(m_prev - m_new)
                  + jnp.sum(jnp.exp(x - m_new), axis=-1, keepdims=True))
    m_ref[...] = m_new

    @pl.when(j == nj - 1)
    def _():
        acc_ref[3] = acc_ref[3] + jnp.sum(
            m_ref[...] + jnp.log(l_ref[...]) - pk_ref[...])

    # ---- finalize + single output writeback on the last grid step ---------
    @pl.when(jnp.logical_and(i == ni - 1, j == nj - 1))
    def _():
        l_cc = acc_ref[0] * inv_cc
        l_rec = acc_ref[1] * inv_rec
        l_sp = acc_ref[2] * inv_sp
        l_adv = acc_ref[3] * inv_adv
        l_cons = cons_ref[0, 0]
        out_ref[0, 0] = (alpha * l_cc + beta * l_adv + sigma * l_sp
                         + delta * l_cons)
        out_ref[0, 1] = l_sp
        out_ref[0, 2] = l_cc
        out_ref[0, 3] = l_adv
        out_ref[0, 4] = l_rec
        out_ref[0, 5] = l_cons


# ----------------------------------------------------------------------------
# Wrapper helpers (no copies: reshape only, native dtypes preserved).
# ----------------------------------------------------------------------------
def _as_2d(x, batch):
    return jnp.asarray(x).reshape(batch, -1)


def _pick_class_tile(num_classes):
    if num_classes <= 2048 or num_classes % 128 != 0:
        return num_classes
    for t in (2048, 1024, 512, 256, 128):
        if num_classes % t == 0:
            return t
    return num_classes


def _pick_row_tile(batch, bytes_per_row, budget):
    # budget accounts for double-buffered input blocks (2x per stream).
    if 2 * batch * bytes_per_row <= budget:
        return batch
    for t in (1024, 512, 256, 128, 64, 32, 16, 8):
        if batch % t == 0 and 2 * t * bytes_per_row <= budget:
            return t
    # TODO(synk): masked ragged row tiles for awkward batch sizes.
    return batch


# ----------------------------------------------------------------------------
# MultimodalLoss forward (Pallas-backed).  `gamma` exists in __init__ but is
# unused in the PyTorch forward; mirrored exactly.  l_rec is computed but (as
# in the reference) excluded from `loss`.
# ----------------------------------------------------------------------------
class MultimodalLossPallas:
    def __init__(self, args, row_tile=None, class_tile=None,
                 vmem_budget_bytes=24 << 20):
        self.alpha = float(args["base"]["alpha"])
        self.beta = float(args["base"]["beta"])
        self.gamma = float(args["base"]["gamma"])   # unused in forward
        self.sigma = float(args["base"]["sigma"])
        self.delta = float(args["base"].get("delta", 1.0))
        self.row_tile = row_tile
        self.class_tile = class_tile
        # Conservative default that fits v5e/v6e/v7x default scoped VMEM.
        self.vmem_budget = int(vmem_budget_bytes)

    def _pair(self, a, b, batch):
        """Return (a2d, b2d, mode, count) without materializing big zeros."""
        if a is None and b is None:
            z = jnp.zeros((batch, 1), jnp.float32)
            return z, z, "zero", 1.0
        if a is None:
            b2 = _as_2d(b, batch)
            return jnp.zeros((batch, 1), jnp.float32), b2, "sq_b", float(b2.size)
        if b is None:
            a2 = _as_2d(a, batch)
            return a2, jnp.zeros((batch, 1), jnp.float32), "sq_a", float(a2.size)
        a2, b2 = _as_2d(a, batch), _as_2d(b, batch)
        return a2, b2, "diff", float(a2.size)

    def __call__(self, out, label):
        labels = jnp.asarray(label["effectiveness_labels"]).astype(jnp.int32)
        batch = int(labels.shape[0])
        labels2 = labels.reshape(batch, 1)

        if "effectiveness_discriminator_out" not in out:
            # The PyTorch fallback (CE on integer zeros_like(labels)) is itself
            # ill-typed; require real logits here.
            raise ValueError("effectiveness_discriminator_out is required")
        logits = _as_2d(out["effectiveness_discriminator_out"], batch)
        num_classes = int(logits.shape[1])

        w2, cc2, mode_cc, n_cc = self._pair(
            out.get("w", None), label["completeness_labels"], batch)
        rec2, comp2, mode_rec, n_rec = self._pair(
            out.get("rec_feats", None), out.get("complete_feats", None), batch)
        sp2, spl2, mode_sp, n_sp = self._pair(
            out["sentiment_preds"], label["sentiment_labels"], batch)

        cons = jnp.asarray(out.get("consistency_loss", 0.0),
                           jnp.float32).reshape(1, 1)

        # ---- tile sizing (per-generation VMEM budget, double-buffered) -----
        tile_c = self.class_tile if self.class_tile is not None else \
            _pick_class_tile(num_classes)
        assert num_classes % tile_c == 0 and (tile_c % 128 == 0
                                              or tile_c == num_classes)

        mse_ops = (w2, cc2, rec2, comp2, sp2, spl2)
        bytes_per_row = (sum(int(a.shape[1]) * a.dtype.itemsize for a in mse_ops)
                         + tile_c * logits.dtype.itemsize + 4)
        tile_b = self.row_tile if self.row_tile is not None else \
            _pick_row_tile(batch, bytes_per_row, self.vmem_budget)
        assert batch % tile_b == 0 and (tile_b % 8 == 0 or tile_b == batch)

        grid = (batch // tile_b, num_classes // tile_c)

        kernel = functools.partial(
            _fused_loss_kernel,
            modes=(mode_cc, mode_rec, mode_sp), tile_c=tile_c,
            inv_cc=1.0 / n_cc, inv_rec=1.0 / n_rec, inv_sp=1.0 / n_sp,
            inv_adv=1.0 / float(batch),
            alpha=self.alpha, beta=self.beta, sigma=self.sigma,
            delta=self.delta)

        def row_spec(arr):
            width = int(arr.shape[1])
            # Pinned across the class axis -> fetched once per row tile.
            return pl.BlockSpec((tile_b, width), lambda i, j: (i, 0))

        in_specs = [
            row_spec(w2), row_spec(cc2),
            pl.BlockSpec((tile_b, tile_c), lambda i, j: (i, j)),   # logits
            pl.BlockSpec((tile_b, 1), lambda i, j: (i, 0)),        # labels
            row_spec(rec2), row_spec(comp2),
            row_spec(sp2), row_spec(spl2),
            pl.BlockSpec((1, 1), lambda i, j: (0, 0),
                         memory_space=pltpu.SMEM),                 # cons
        ]

        o = pl.pallas_call(
            kernel,
            out_shape=jax.ShapeDtypeStruct((1, 6), jnp.float32),
            grid_spec=pltpu.PrefetchScalarGridSpec(
                num_scalar_prefetch=0,
                grid=grid,
                in_specs=in_specs,
                out_specs=pl.BlockSpec((1, 6), lambda i, j: (0, 0),
                                       memory_space=pltpu.SMEM),
                scratch_shapes=[
                    pltpu.SMEM((4,), jnp.float32),        # partial sums
                    pltpu.VMEM((tile_b, 1), jnp.float32),  # running max
                    pltpu.VMEM((tile_b, 1), jnp.float32),  # running sum
                    pltpu.VMEM((tile_b, 1), jnp.float32),  # picked logit
                ]),
            compiler_params=pltpu.CompilerParams(
                dimension_semantics=("arbitrary", "arbitrary")),
        )(w2, cc2, logits, labels2, rec2, comp2, sp2, spl2, cons)

        return {
            "loss": o[0, 0],
            "l_sp": o[0, 1],
            "l_cc": o[0, 2],
            "l_adv": o[0, 3],
            "l_rec": o[0, 4],
            "l_consistency": o[0, 5],
        }


# ----------------------------------------------------------------------------
# Pure-JAX reference mirroring the PyTorch .get() defaults.
# ----------------------------------------------------------------------------
def _ref_forward(args, out, label):
    def mse(a, b):
        a = jnp.asarray(a, jnp.float32)
        b = jnp.asarray(b, jnp.float32)
        return jnp.mean((a - b) ** 2)

    cc = jnp.asarray(label["completeness_labels"], jnp.float32)
    l_cc = mse(out["w"], cc) if "w" in out else jnp.mean(cc ** 2)

    logits = jnp.asarray(out["effectiveness_discriminator_out"], jnp.float32)
    lbl = jnp.asarray(label["effectiveness_labels"], jnp.int32)
    lse = jax.nn.logsumexp(logits, axis=-1)
    picked = jnp.take_along_axis(logits, lbl[:, None], axis=-1)[:, 0]
    l_adv = jnp.mean(lse - picked)

    rec, comp = out.get("rec_feats", None), out.get("complete_feats", None)
    if rec is None and comp is None:
        l_rec = jnp.float32(0.0)
    elif rec is None:
        l_rec = jnp.mean(jnp.asarray(comp, jnp.float32) ** 2)
    elif comp is None:
        l_rec = jnp.mean(jnp.asarray(rec, jnp.float32) ** 2)
    else:
        l_rec = mse(rec, comp)

    l_sp = mse(out["sentiment_preds"], label["sentiment_labels"])
    l_cons = jnp.asarray(out.get("consistency_loss", 0.0), jnp.float32)

    base = args["base"]
    loss = (base["alpha"] * l_cc + base["beta"] * l_adv + base["sigma"] * l_sp
            + base.get("delta", 1.0) * l_cons)
    return {"loss": loss, "l_sp": l_sp, "l_cc": l_cc, "l_adv": l_adv,
            "l_rec": l_rec, "l_consistency": l_cons}


def _check(res, ref):
    for k in ("loss", "l_sp", "l_cc", "l_adv", "l_rec", "l_consistency"):
        assert jnp.allclose(res[k], ref[k], rtol=1e-4, atol=1e-5), (
            k, res[k], ref[k])


if __name__ == "__main__":
    args = {"base": {"alpha": 1.0, "beta": 0.5, "gamma": 0.3, "sigma": 1.0,
                     "delta": 1.0}}

    key = jax.random.PRNGKey(0)
    ks = jax.random.split(key, 8)
    B, C, FCC, D = 16, 256, 4, 32   # batch, classes, completeness dim, feat dim

    out = {
        "w": jax.random.normal(ks[0], (B, FCC), jnp.float32),
        "effectiveness_discriminator_out": jax.random.normal(ks[1], (B, C),
                                                             jnp.float32),
        "rec_feats": jax.random.normal(ks[2], (B, D), jnp.float32),
        "complete_feats": jax.random.normal(ks[3], (B, D), jnp.float32),
        "sentiment_preds": jax.random.normal(ks[4], (B, 1), jnp.float32),
        "consistency_loss": jnp.float32(0.1),
    }
    label = {
        "completeness_labels": jax.random.normal(ks[5], (B, FCC), jnp.float32),
        "effectiveness_labels": jax.random.randint(ks[6], (B,), 0, C, jnp.int32),
        "sentiment_labels": jax.random.normal(ks[7], (B, 1), jnp.float32),
    }

    # Test 1: forced row/class tiling -> grid (2, 2); exercises the online
    # logsumexp and cross-tile accumulation.
    res1 = MultimodalLossPallas(args, row_tile=8, class_tile=128)(out, label)
    res1 = jax.tree_util.tree_map(jax.block_until_ready, res1)
    _check(res1, _ref_forward(args, out, label))

    # Test 2: native-bf16 features shipped to the kernel, missing 'w' and
    # missing consistency_loss; auto tiling (single block).
    out2 = dict(out)
    del out2["w"]
    del out2["consistency_loss"]
    out2["rec_feats"] = out["rec_feats"].astype(jnp.bfloat16)
    out2["complete_feats"] = out["complete_feats"].astype(jnp.bfloat16)
    res2 = MultimodalLossPallas(args)(out2, label)
    res2 = jax.tree_util.tree_map(jax.block_until_ready, res2)
    _check(res2, _ref_forward(args, out2, label))

    # Test 3: both rec_feats and complete_feats missing -> l_rec == 0.
    out3 = dict(out)
    del out3["rec_feats"]
    del out3["complete_feats"]
    res3 = MultimodalLossPallas(args)(out3, label)
    res3 = jax.tree_util.tree_map(jax.block_until_ready, res3)
    _check(res3, _ref_forward(args, out3, label))

    print("KERNEL_OK")
</pallas_src>

<mosaic_0001>
module attributes {stable_mosaic.version = 11 : i64} {
  func.func @_fused_loss_kernel(%arg0: i32, %arg1: i32, %arg2: memref<8x4xf32, #tpu.memory_space<vmem>>, %arg3: memref<8x4xf32, #tpu.memory_space<vmem>>, %arg4: memref<8x128xf32, #tpu.memory_space<vmem>>, %arg5: memref<8x1xi32, #tpu.memory_space<vmem>>, %arg6: memref<8x32xf32, #tpu.memory_space<vmem>>, %arg7: memref<8x32xf32, #tpu.memory_space<vmem>>, %arg8: memref<8x1xf32, #tpu.memory_space<vmem>>, %arg9: memref<8x1xf32, #tpu.memory_space<vmem>>, %arg10: memref<1x1xf32, #tpu.memory_space<smem>>, %arg11: memref<1x6xf32, #tpu.memory_space<smem>>, %arg12: memref<4xf32, #tpu.memory_space<smem>>, %arg13: memref<8x1xf32, #tpu.memory_space<vmem>>, %arg14: memref<8x1xf32, #tpu.memory_space<vmem>>, %arg15: memref<8x1xf32, #tpu.memory_space<vmem>>) attributes {dimension_semantics = [#tpu.dimension_semantics<arbitrary>, #tpu.dimension_semantics<arbitrary>], iteration_bounds = array<i64: 2, 2>, scalar_prefetch = 0 : i64, scratch_operands = 4 : i64, tpu.core_type = #tpu.core_type<tc>, window_params = [{transform_indices = @transform_0, window_bounds = array<i64: 8, 4>}, {transform_indices = @transform_1, window_bounds = array<i64: 8, 4>}, {transform_indices = @transform_2, window_bounds = array<i64: 8, 128>}, {transform_indices = @transform_3, window_bounds = array<i64: 8, 1>}, {transform_indices = @transform_4, window_bounds = array<i64: 8, 32>}, {transform_indices = @transform_5, window_bounds = array<i64: 8, 32>}, {transform_indices = @transform_6, window_bounds = array<i64: 8, 1>}, {transform_indices = @transform_7, window_bounds = array<i64: 8, 1>}, {transform_indices = @transform_8, window_bounds = array<i64: 1, 1>}, {transform_indices = @transform_9, window_bounds = array<i64: 1, 6>}]} {
    %c0_i32 = arith.constant 0 : i32
    %0 = arith.cmpi eq, %arg0, %c0_i32 : i32
    %c0_i32_0 = arith.constant 0 : i32
    %1 = arith.cmpi eq, %arg1, %c0_i32_0 : i32
    %2 = arith.andi %0, %1 : i1
    %3 = arith.extui %2 : i1 to i32
    %c0_i32_1 = arith.constant 0 : i32
    %4 = arith.cmpi ne, %3, %c0_i32_1 : i32
    scf.if %4 {
      %cst_28 = arith.constant 0.000000e+00 : f32
      %c0_29 = arith.constant 0 : index
      %50 = memref.load %arg12[%c0_29] : memref<4xf32, #tpu.memory_space<smem>>
      memref.store %cst_28, %arg12[%c0_29] : memref<4xf32, #tpu.memory_space<smem>>
      %cst_30 = arith.constant 0.000000e+00 : f32
      %c1 = arith.constant 1 : index
      %51 = memref.load %arg12[%c1] : memref<4xf32, #tpu.memory_space<smem>>
      memref.store %cst_30, %arg12[%c1] : memref<4xf32, #tpu.memory_space<smem>>
      %cst_31 = arith.constant 0.000000e+00 : f32
      %c2 = arith.constant 2 : index
      %52 = memref.load %arg12[%c2] : memref<4xf32, #tpu.memory_space<smem>>
      memref.store %cst_31, %arg12[%c2] : memref<4xf32, #tpu.memory_space<smem>>
      %cst_32 = arith.constant 0.000000e+00 : f32
      %c3 = arith.constant 3 : index
      %53 = memref.load %arg12[%c3] : memref<4xf32, #tpu.memory_space<smem>>
      memref.store %cst_32, %arg12[%c3] : memref<4xf32, #tpu.memory_space<smem>>
    } else {
    }
    %c0_i32_2 = arith.constant 0 : i32
    %5 = arith.cmpi eq, %arg1, %c0_i32_2 : i32
    %6 = arith.extui %5 : i1 to i32
    %c0_i32_3 = arith.constant 0 : i32
    %7 = arith.cmpi ne, %6, %c0_i32_3 : i32
    scf.if %7 {
      %c0_28 = arith.constant 0 : index
      %50 = memref.load %arg12[%c0_28] : memref<4xf32, #tpu.memory_space<smem>>
      %c0_29 = arith.constant 0 : index
      %c0_30 = arith.constant 0 : index
      %51 = vector.load %arg2[%c0_29, %c0_30] : memref<8x4xf32, #tpu.memory_space<vmem>>, vector<8x4xf32>
      %c0_31 = arith.constant 0 : index
      %c0_32 = arith.constant 0 : index
      %52 = vector.load %arg3[%c0_31, %c0_32] : memref<8x4xf32, #tpu.memory_space<vmem>>, vector<8x4xf32>
      %53 = arith.subf %51, %52 : vector<8x4xf32>
      %54 = arith.mulf %53, %53 : vector<8x4xf32>
      %55 = vector.shape_cast %54 : vector<8x4xf32> to vector<1x8x4xf32>
      %cst_33 = arith.constant dense<0.000000e+00> : vector<1xf32>
      %56 = vector.multi_reduction <add>, %55, %cst_33 [1, 2] : vector<1x8x4xf32> to vector<1xf32>
      %57 = vector.shape_cast %56 : vector<1xf32> to vector<1x1x1xf32>
      %58 = vector.extract %57[0, 0, 0] : f32 from vector<1x1x1xf32>
      %59 = arith.addf %50, %58 : f32
      %c0_34 = arith.constant 0 : index
      %60 = memref.load %arg12[%c0_34] : memref<4xf32, #tpu.memory_space<smem>>
      memref.store %59, %arg12[%c0_34] : memref<4xf32, #tpu.memory_space<smem>>
      %c1 = arith.constant 1 : index
      %61 = memref.load %arg12[%c1] : memref<4xf32, #tpu.memory_space<smem>>
      %c0_35 = arith.constant 0 : index
      %c0_36 = arith.constant 0 : index
      %62 = vector.load %arg6[%c0_35, %c0_36] : memref<8x32xf32, #tpu.memory_space<vmem>>, vector<8x32xf32>
      %c0_37 = arith.constant 0 : index
      %c0_38 = arith.constant 0 : index
      %63 = vector.load %arg7[%c0_37, %c0_38] : memref<8x32xf32, #tpu.memory_space<vmem>>, vector<8x32xf32>
      %64 = arith.subf %62, %63 : vector<8x32xf32>
      %65 = arith.mulf %64, %64 : vector<8x32xf32>
      %66 = vector.shape_cast %65 : vector<8x32xf32> to vector<1x8x32xf32>
      %cst_39 = arith.constant dense<0.000000e+00> : vector<1xf32>
      %67 = vector.multi_reduction <add>, %66, %cst_39 [1, 2] : vector<1x8x32xf32> to vector<1xf32>
      %68 = vector.shape_cast %67 : vector<1xf32> to vector<1x1x1xf32>
      %69 = vector.extract %68[0, 0, 0] : f32 from vector<1x1x1xf32>
      %70 = arith.addf %61, %69 : f32
      %c1_40 = arith.constant 1 : index
      %71 = memref.load %arg12[%c1_40] : memref<4xf32, #tpu.memory_space<smem>>
      memref.store %70, %arg12[%c1_40] : memref<4xf32, #tpu.memory_space<smem>>
      %c2 = arith.constant 2 : index
      %72 = memref.load %arg12[%c2] : memref<4xf32, #tpu.memory_space<smem>>
      %c0_41 = arith.constant 0 : index
      %c0_42 = arith.constant 0 : index
      %73 = vector.load %arg8[%c0_41, %c0_42] : memref<8x1xf32, #tpu.memory_space<vmem>>, vector<8x1xf32>
      %c0_43 = arith.constant 0 : index
      %c0_44 = arith.constant 0 : index
      %74 = vector.load %arg9[%c0_43, %c0_44] : memref<8x1xf32, #tpu.memory_space<vmem>>, vector<8x1xf32>
      %75 = arith.subf %73, %74 : vector<8x1xf32>
      %76 = arith.mulf %75, %75 : vector<8x1xf32>
      %77 = vector.shape_cast %76 : vector<8x1xf32> to vector<1x8x1xf32>
      %cst_45 = arith.constant dense<0.000000e+00> : vector<1xf32>
      %78 = vector.multi_reduction <add>, %77, %cst_45 [1, 2] : vector<1x8x1xf32> to vector<1xf32>
      %79 = vector.shape_cast %78 : vector<1xf32> to vector<1x1x1xf32>
      %80 = vector.extract %79[0, 0, 0] : f32 from vector<1x1x1xf32>
      %81 = arith.addf %72, %80 : f32
      %c2_46 = arith.constant 2 : index
      %82 = memref.load %arg12[%c2_46] : memref<4xf32, #tpu.memory_space<smem>>
      memref.store %81, %arg12[%c2_46] : memref<4xf32, #tpu.memory_space<smem>>
    } else {
    }
    %c0_i32_4 = arith.constant 0 : i32
    %8 = arith.cmpi eq, %arg1, %c0_i32_4 : i32
    %9 = arith.extui %8 : i1 to i32
    %c0_i32_5 = arith.constant 0 : i32
    %10 = arith.cmpi ne, %9, %c0_i32_5 : i32
    scf.if %10 {
      %cst_28 = arith.constant 0xFF800000 : f32
      %50 = vector.broadcast %cst_28 : f32 to vector<8x1xf32>
      %c0_29 = arith.constant 0 : index
      %c0_30 = arith.constant 0 : index
      %51 = vector.load %arg13[%c0_29, %c0_30] : memref<8x1xf32, #tpu.memory_space<vmem>>, vector<8x1xf32>
      tpu.vector_store %arg13[%c0_29, %c0_30], %50 {strides = array<i32>} : memref<8x1xf32, #tpu.memory_space<vmem>>, vector<8x1xf32>,
      %cst_31 = arith.constant 0.000000e+00 : f32
      %52 = vector.broadcast %cst_31 : f32 to vector<8x1xf32>
      %c0_32 = arith.constant 0 : index
      %c0_33 = arith.constant 0 : index
      %53 = vector.load %arg14[%c0_32, %c0_33] : memref<8x1xf32, #tpu.memory_space<vmem>>, vector<8x1xf32>
      tpu.vector_store %arg14[%c0_32, %c0_33], %52 {strides = array<i32>} : memref<8x1xf32, #tpu.memory_space<vmem>>, vector<8x1xf32>,
      %cst_34 = arith.constant 0.000000e+00 : f32
      %54 = vector.broadcast %cst_34 : f32 to vector<8x1xf32>
      %c0_35 = arith.constant 0 : index
      %c0_36 = arith.constant 0 : index
      %55 = vector.load %arg15[%c0_35, %c0_36] : memref<8x1xf32, #tpu.memory_space<vmem>>, vector<8x1xf32>
      tpu.vector_store %arg15[%c0_35, %c0_36], %54 {strides = array<i32>} : memref<8x1xf32, #tpu.memory_space<vmem>>, vector<8x1xf32>,
    } else {
    }
    %c0 = arith.constant 0 : index
    %c0_6 = arith.constant 0 : index
    %11 = vector.load %arg4[%c0, %c0_6] : memref<8x128xf32, #tpu.memory_space<vmem>>, vector<8x128xf32>
    %12 = tpu.iota {dimensions = array<i32: 1>} : vector<8x128xi32>
    %c128_i32 = arith.constant 128 : i32
    %13 = arith.muli %arg1, %c128_i32 : i32
    %14 = vector.broadcast %13 : i32 to vector<8x128xi32>
    %15 = arith.addi %12, %14 : vector<8x128xi32>
    %c0_7 = arith.constant 0 : index
    %c0_8 = arith.constant 0 : index
    %16 = vector.load %arg15[%c0_7, %c0_8] : memref<8x1xf32, #tpu.memory_space<vmem>>, vector<8x1xf32>
    %c0_9 = arith.constant 0 : index
    %c0_10 = arith.constant 0 : index
    %17 = vector.load %arg5[%c0_9, %c0_10] : memref<8x1xi32, #tpu.memory_space<vmem>>, vector<8x1xi32>
    %18 = vector.broadcast %17 : vector<8x1xi32> to vector<8x128xi32>
    %19 = arith.cmpi eq, %15, %18 : vector<8x128xi32>
    %cst = arith.constant 0.000000e+00 : f32
    %20 = vector.broadcast %cst : f32 to vector<8x128xf32>
    %21 = arith.select %19, %11, %20 : vector<8x128xi1>, vector<8x128xf32>
    %cst_11 = arith.constant dense<0.000000e+00> : vector<8xf32>
    %22 = vector.multi_reduction <add>, %21, %cst_11 [1] : vector<8x128xf32> to vector<8xf32>
    %23 = vector.shape_cast %22 : vector<8xf32> to vector<8x1xf32>
    %24 = arith.addf %16, %23 : vector<8x1xf32>
    %c0_12 = arith.constant 0 : index
    %c0_13 = arith.constant 0 : index
    %25 = vector.load %arg15[%c0_12, %c0_13] : memref<8x1xf32, #tpu.memory_space<vmem>>, vector<8x1xf32>
    tpu.vector_store %arg15[%c0_12, %c0_13], %24 {strides = array<i32>} : memref<8x1xf32, #tpu.memory_space<vmem>>, vector<8x1xf32>,
    %c0_14 = arith.constant 0 : index
    %c0_15 = arith.constant 0 : index
    %26 = vector.load %arg13[%c0_14, %c0_15] : memref<8x1xf32, #tpu.memory_space<vmem>>, vector<8x1xf32>
    %cst_16 = arith.constant dense<0xFF800000> : vector<8xf32>
    %27 = vector.multi_reduction <maximumf>, %11, %cst_16 [1] : vector<8x128xf32> to vector<8xf32>
    %28 = vector.shape_cast %27 : vector<8xf32> to vector<8x1xf32>
    %29 = arith.maximumf %26, %28 : vector<8x1xf32>
    %c0_17 = arith.constant 0 : index
    %c0_18 = arith.constant 0 : index
    %30 = vector.load %arg14[%c0_17, %c0_18] : memref<8x1xf32, #tpu.memory_space<vmem>>, vector<8x1xf32>
    %31 = arith.subf %26, %29 : vector<8x1xf32>
    %32 = math.exp %31 : vector<8x1xf32>
    %33 = arith.mulf %30, %32 : vector<8x1xf32>
    %34 = vector.broadcast %29 : vector<8x1xf32> to vector<8x128xf32>
    %35 = arith.subf %11, %34 : vector<8x128xf32>
    %36 = math.exp %35 : vector<8x128xf32>
    %cst_19 = arith.constant dense<0.000000e+00> : vector<8xf32>
    %37 = vector.multi_reduction <add>, %36, %cst_19 [1] : vector<8x128xf32> to vector<8xf32>
    %38 = vector.shape_cast %37 : vector<8xf32> to vector<8x1xf32>
    %39 = arith.addf %33, %38 : vector<8x1xf32>
    %c0_20 = arith.constant 0 : index
    %c0_21 = arith.constant 0 : index
    %40 = vector.load %arg14[%c0_20, %c0_21] : memref<8x1xf32, #tpu.memory_space<vmem>>, vector<8x1xf32>
    tpu.vector_store %arg14[%c0_20, %c0_21], %39 {strides = array<i32>} : memref<8x1xf32, #tpu.memory_space<vmem>>, vector<8x1xf32>,
    %c0_22 = arith.constant 0 : index
    %c0_23 = arith.constant 0 : index
    %41 = vector.load %arg13[%c0_22, %c0_23] : memref<8x1xf32, #tpu.memory_space<vmem>>, vector<8x1xf32>
    tpu.vector_store %arg13[%c0_22, %c0_23], %29 {strides = array<i32>} : memref<8x1xf32, #tpu.memory_space<vmem>>, vector<8x1xf32>,
    %c1_i32 = arith.constant 1 : i32
    %42 = arith.cmpi eq, %arg1, %c1_i32 : i32
    %43 = arith.extui %42 : i1 to i32
    %c0_i32_24 = arith.constant 0 : i32
    %44 = arith.cmpi ne, %43, %c0_i32_24 : i32
    scf.if %44 {
      %c3 = arith.constant 3 : index
      %50 = memref.load %arg12[%c3] : memref<4xf32, #tpu.memory_space<smem>>
      %c0_28 = arith.constant 0 : index
      %c0_29 = arith.constant 0 : index
      %51 = vector.load %arg13[%c0_28, %c0_29] : memref<8x1xf32, #tpu.memory_space<vmem>>, vector<8x1xf32>
      %c0_30 = arith.constant 0 : index
      %c0_31 = arith.constant 0 : index
      %52 = vector.load %arg14[%c0_30, %c0_31] : memref<8x1xf32, #tpu.memory_space<vmem>>, vector<8x1xf32>
      %53 = math.log %52 : vector<8x1xf32>
      %54 = arith.addf %51, %53 : vector<8x1xf32>
      %c0_32 = arith.constant 0 : index
      %c0_33 = arith.constant 0 : index
      %55 = vector.load %arg15[%c0_32, %c0_33] : memref<8x1xf32, #tpu.memory_space<vmem>>, vector<8x1xf32>
      %56 = arith.subf %54, %55 : vector<8x1xf32>
      %57 = vector.shape_cast %56 : vector<8x1xf32> to vector<1x8x1xf32>
      %cst_34 = arith.constant dense<0.000000e+00> : vector<1xf32>
      %58 = vector.multi_reduction <add>, %57, %cst_34 [1, 2] : vector<1x8x1xf32> to vector<1xf32>
      %59 = vector.shape_cast %58 : vector<1xf32> to vector<1x1x1xf32>
      %60 = vector.extract %59[0, 0, 0] : f32 from vector<1x1x1xf32>
      %61 = arith.addf %50, %60 : f32
      %c3_35 = arith.constant 3 : index
      %62 = memref.load %arg12[%c3_35] : memref<4xf32, #tpu.memory_space<smem>>
      memref.store %61, %arg12[%c3_35] : memref<4xf32, #tpu.memory_space<smem>>
    } else {
    }
    %c1_i32_25 = arith.constant 1 : i32
    %45 = arith.cmpi eq, %arg0, %c1_i32_25 : i32
    %c1_i32_26 = arith.constant 1 : i32
    %46 = arith.cmpi eq, %arg1, %c1_i32_26 : i32
    %47 = arith.andi %45, %46 : i1
    %48 = arith.extui %47 : i1 to i32
    %c0_i32_27 = arith.constant 0 : i32
    %49 = arith.cmpi ne, %48, %c0_i32_27 : i32
    scf.if %49 {
      %c0_28 = arith.constant 0 : index
      %50 = memref.load %arg12[%c0_28] : memref<4xf32, #tpu.memory_space<smem>>
      %cst_29 = arith.constant 1.562500e-02 : f32
      %51 = arith.mulf %50, %cst_29 : f32
      %c1 = arith.constant 1 : index
      %52 = memref.load %arg12[%c1] : memref<4xf32, #tpu.memory_space<smem>>
      %cst_30 = arith.constant 0.001953125 : f32
      %53 = arith.mulf %52, %cst_30 : f32
      %c2 = arith.constant 2 : index
      %54 = memref.load %arg12[%c2] : memref<4xf32, #tpu.memory_space<smem>>
      %cst_31 = arith.constant 6.250000e-02 : f32
      %55 = arith.mulf %54, %cst_31 : f32
      %c3 = arith.constant 3 : index
      %56 = memref.load %arg12[%c3] : memref<4xf32, #tpu.memory_space<smem>>
      %cst_32 = arith.constant 6.250000e-02 : f32
      %57 = arith.mulf %56, %cst_32 : f32
      %c0_33 = arith.constant 0 : index
      %c0_34 = arith.constant 0 : index
      %58 = memref.load %arg10[%c0_33, %c0_34] : memref<1x1xf32, #tpu.memory_space<smem>>
      %cst_35 = arith.constant 1.000000e+00 : f32
      %59 = arith.mulf %cst_35, %51 : f32
      %cst_36 = arith.constant 5.000000e-01 : f32
      %60 = arith.mulf %cst_36, %57 : f32
      %61 = arith.addf %59, %60 : f32
      %cst_37 = arith.constant 1.000000e+00 : f32
      %62 = arith.mulf %cst_37, %55 : f32
      %63 = arith.addf %61, %62 : f32
      %cst_38 = arith.constant 1.000000e+00 : f32
      %64 = arith.mulf %cst_38, %58 : f32
      %65 = arith.addf %63, %64 : f32
      %c0_39 = arith.constant 0 : index
      %c0_40 = arith.constant 0 : index
      %66 = memref.load %arg11[%c0_39, %c0_40] : memref<1x6xf32, #tpu.memory_space<smem>>
      memref.store %65, %arg11[%c0_39, %c0_40] : memref<1x6xf32, #tpu.memory_space<smem>>
      %c0_41 = arith.constant 0 : index
      %c1_42 = arith.constant 1 : index
      %67 = memref.load %arg11[%c0_41, %c1_42] : memref<1x6xf32, #tpu.memory_space<smem>>
      memref.store %55, %arg11[%c0_41, %c1_42] : memref<1x6xf32, #tpu.memory_space<smem>>
      %c0_43 = arith.constant 0 : index
      %c2_44 = arith.constant 2 : index
      %68 = memref.load %arg11[%c0_43, %c2_44] : memref<1x6xf32, #tpu.memory_space<smem>>
      memref.store %51, %arg11[%c0_43, %c2_44] : memref<1x6xf32, #tpu.memory_space<smem>>
      %c0_45 = arith.constant 0 : index
      %c3_46 = arith.constant 3 : index
      %69 = memref.load %arg11[%c0_45, %c3_46] : memref<1x6xf32, #tpu.memory_space<smem>>
      memref.store %57, %arg11[%c0_45, %c3_46] : memref<1x6xf32, #tpu.memory_space<smem>>
      %c0_47 = arith.constant 0 : index
      %c4 = arith.constant 4 : index
      %70 = memref.load %arg11[%c0_47, %c4] : memref<1x6xf32, #tpu.memory_space<smem>>
      memref.store %53, %arg11[%c0_47, %c4] : memref<1x6xf32, #tpu.memory_space<smem>>
      %c0_48 = arith.constant 0 : index
      %c5 = arith.constant 5 : index
      %71 = memref.load %arg11[%c0_48, %c5] : memref<1x6xf32, #tpu.memory_space<smem>>
      memref.store %58, %arg11[%c0_48, %c5] : memref<1x6xf32, #tpu.memory_space<smem>>
    } else {
    }
    return
  }
  func.func @transform_0(%arg0: i32, %arg1: i32) -> (i32, i32) {
    %c0_i32 = arith.constant 0 : i32
    %c0_i32_0 = arith.constant 0 : i32
    return %arg0, %c0_i32 : i32, i32
  }
  func.func @transform_1(%arg0: i32, %arg1: i32) -> (i32, i32) {
    %c0_i32 = arith.constant 0 : i32
    %c0_i32_0 = arith.constant 0 : i32
    return %arg0, %c0_i32 : i32, i32
  }
  func.func @transform_2(%arg0: i32, %arg1: i32) -> (i32, i32) {
    %c0_i32 = arith.constant 0 : i32
    return %arg0, %arg1 : i32, i32
  }
  func.func @transform_3(%arg0: i32, %arg1: i32) -> (i32, i32) {
    %c0_i32 = arith.constant 0 : i32
    %c0_i32_0 = arith.constant 0 : i32
    return %arg0, %c0_i32 : i32, i32
  }
  func.func @transform_4(%arg0: i32, %arg1: i32) -> (i32, i32) {
    %c0_i32 = arith.constant 0 : i32
    %c0_i32_0 = arith.constant 0 : i32
    return %arg0, %c0_i32 : i32, i32
  }
  func.func @transform_5(%arg0: i32, %arg1: i32) -> (i32, i32) {
    %c0_i32 = arith.constant 0 : i32
    %c0_i32_0 = arith.constant 0 : i32
    return %arg0, %c0_i32 : i32, i32
  }
  func.func @transform_6(%arg0: i32, %arg1: i32) -> (i32, i32) {
    %c0_i32 = arith.constant 0 : i32
    %c0_i32_0 = arith.constant 0 : i32
    return %arg0, %c0_i32 : i32, i32
  }
  func.func @transform_7(%arg0: i32, %arg1: i32) -> (i32, i32) {
    %c0_i32 = arith.constant 0 : i32
    %c0_i32_0 = arith.constant 0 : i32
    return %arg0, %c0_i32 : i32, i32
  }
  func.func @transform_8(%arg0: i32, %arg1: i32) -> (i32, i32) {
    %c0_i32 = arith.constant 0 : i32
    %c0_i32_0 = arith.constant 0 : i32
    %c0_i32_1 = arith.constant 0 : i32
    return %c0_i32, %c0_i32_0 : i32, i32
  }
  func.func @transform_9(%arg0: i32, %arg1: i32) -> (i32, i32) {
    %c0_i32 = arith.constant 0 : i32
    %c0_i32_0 = arith.constant 0 : i32
    %c0_i32_1 = arith.constant 0 : i32
    return %c0_i32, %c0_i32_0 : i32, i32
  }
}

</mosaic_0001>

<llo_original>
// kernel: tpu_custom_call.1
$region0: #{tpu_custom_call.1}
  #allocation0 [shape = 'u32[]', space=smem, size = 0x4, offset = 0x4, fixed_abs, tag = 'smem constant byte address 0x4 - core index']
  #allocation1 [shape = 'u32[144,128]{1,0:T(1,128)}', space=vmem, size = 0x12000, scoped, tag = 'internal scratch']
  #allocation2 [shape = 'f32[4]{0:T(128)}', space=smem, size = 0x200, scoped, tag = 'scratch operand']
  #allocation3 [shape = 'f32[8,1]{1,0:T(8,128)}', space=vmem, size = 0x1000, scoped, tag = 'scratch operand']
  #allocation4 [shape = 'f32[8,1]{1,0:T(8,128)}', space=vmem, size = 0x1000, scoped, tag = 'scratch operand']
  #allocation5 [shape = 'f32[8,1]{1,0:T(8,128)}', space=vmem, size = 0x1000, scoped, tag = 'scratch operand']
  #allocation6 [shape = 'f32[1,1]{1,0:T(1,128)S(6)}', space=smem, size = 0x200, scoped, tag = 'scoped memory for tpu_custom_call.1']
  %s0 = inlined_call_operand.vmem [shape: f32[16,4], index: 0, kind: input, shape index: {}]
  %s1 = inlined_call_operand.vmem [shape: f32[16,4], index: 1, kind: input, shape index: {}]
  %s2 = inlined_call_operand.vmem [shape: f32[16,256], index: 2, kind: input, shape index: {}]
  %s3 = inlined_call_operand.vmem [shape: s32[16,1], index: 3, kind: input, shape index: {}]
  %s4 = inlined_call_operand.vmem [shape: f32[16,32], index: 4, kind: input, shape index: {}]
  %s5 = inlined_call_operand.vmem [shape: f32[16,32], index: 5, kind: input, shape index: {}]
  %s6 = inlined_call_operand.vmem [shape: f32[16,1], index: 6, kind: input, shape index: {}]
  %s7 = inlined_call_operand.vmem [shape: f32[16,1], index: 7, kind: input, shape index: {}]
  %s8 = inlined_call_operand.<no memory space> [shape: f32[1,1], index: 8, kind: input, shape index: {}]
  %s9 = inlined_call_operand.hbm [shape: f32[1,6], index: 9, kind: output, shape index: {}]
  %s10 = sld [smem:[#allocation0]]
  $region85: #{tpu_custom_call.1} parent=0
    _
  %s12 = ssub.s32 1, %s10
  %s13 = scalar_select 0, %s12, %s10
  %14 = sst [smem:[#allocation6]] %s8
  $region1: #{tpu_custom_call.1} parent=0
    #allocation7 [shape = 'u8[512]{0}', space=smem, size = 0x200, scoped, tag = 'output window, operand 0, single buffered']
    #allocation8 [shape = 's32[2]{0}', space=sflag, size = 0x8, scoped, tag = 'scoped memory for tpu_custom_call.1']
    %15 = vsyncpa [#allocation8], 0
    loop: start=0, step=1, limit=6
    $region2: #{tpu_custom_call.1} parent=1 // loop_pre_header
      _
    $region3: #{tpu_custom_call.1} parent=1 // loop_header
      %s17 = sphi 0, %s21
      %p18 = scmp.ge.s32.totalorder %s17, 6
      %s24 = sphi 0, %s36
      %s25 = sphi 0, %s32
      %s26 = sphi 0, %s24
      %s27 = sphi 0, %s25
      %s28 = sphi 0, %s26
      %s29 = sphi 0, %s27
      %s39 = sphi 0, %s41
      %s42 = sphi 0, %s39
      %s43 = sphi 0, %s42
      %s59 = sphi 0, %s43
      %s65 = sphi 0, %s67
      %s68 = sphi 0, %s65
      %s69 = sphi 0, %s68
      %s85 = sphi 0, %s69
      %s93 = sphi 0, %s95
      %s96 = sphi 0, %s93
      %s97 = sphi 0, %s96
      %s113 = sphi 0, %s97
      %s119 = sphi 0, %s121
      %s122 = sphi 0, %s119
      %s123 = sphi 0, %s122
      %s139 = sphi 0, %s123
      %s145 = sphi 0, %s147
      %s148 = sphi 0, %s145
      %s149 = sphi 0, %s148
      %s165 = sphi 0, %s149
      %s171 = sphi 0, %s173
      %s174 = sphi 0, %s171
      %s175 = sphi 0, %s174
      %s191 = sphi 0, %s175
      %s197 = sphi 0, %s199
      %s200 = sphi 0, %s197
      %s201 = sphi 0, %s200
      %s217 = sphi 0, %s201
      %s223 = sphi 0, %s225
      %s226 = sphi 0, %s223
      %s227 = sphi 0, %s226
      %s243 = sphi 0, %s227
      %s247 = sphi 0, %s247
      %s249 = sphi 0, %s247
      %s250 = sphi 0, %s249
      %s264 = sphi 0, %s250
      %s268 = sphi 0, %s268
      %s270 = sphi 0, %s268
      %s271 = sphi 0, %s270
      %s285 = sphi 0, %s271
    $region4: #{tpu_custom_call.1} parent=1 // loop_header_branch
      %20 = sbr.rel (%p18) target = $region8
    $region5: #{tpu_custom_call.1} parent=1 // loop_body
      %s22 = ssub.s32 %s17, 1
      %s23 = ssub.s32 %s17, 2
      %s30 = sadd.s32 1, %s25
      %p31 = scmp.ge.s32.totalorder %s30, 2
      %s32 = scalar_select %p31, 0, %s30
      %s33 = sadd.s32 1, %s24
      %s34 = scalar_select %p31, %s33, %s24
      %p35 = scmp.ge.s32.totalorder %s34, 2
      %s36 = scalar_select %p35, 0, %s34
      %s37 = ssub.s32 %s24, %s36
      %p38 = scmp.eq.s32.totalorder %s37, 0
      %s40 = sadd.s32 %s39, 1
      %s41 = scalar_select %p38, %s39, %s40
      %p44 = pneg %p38
      %p45 = scmp.eq.s32.totalorder %s17, 3
      %p46 = por %p44, %p45
      %p47 = scmp.ne.s32.totalorder %s39, %s42
      %p48 = scmp.eq.s32.totalorder %s17, 0
      %p49 = por %p47, %p48
      %p50 = scmp.ne.s32.totalorder %s39, %s42
      %p51 = scmp.eq.s32.totalorder %s22, 3
      %p52 = por %p50, %p51
      %p53 = scmp.ne.s32.totalorder %s42, %s43
      %p54 = scmp.eq.s32.totalorder %s22, 0
      %p55 = por %p53, %p54
      %p56 = scmp.ne.s32.totalorder %s42, %s43
      %p57 = scmp.eq.s32.totalorder %s23, 3
      %p58 = por %p56, %p57
      %p60 = scmp.ne.s32.totalorder %s43, %s59
      %p61 = scmp.eq.s32.totalorder %s23, 0
      %p62 = por %p60, %p61
      %s63 = ssub.s32 %s24, %s36
      %p64 = scmp.eq.s32.totalorder %s63, 0
      %s66 = sadd.s32 %s65, 1
      %s67 = scalar_select %p64, %s65, %s66
      %p70 = pneg %p64
      %p71 = scmp.eq.s32.totalorder %s17, 3
      %p72 = por %p70, %p71
      %p73 = scmp.ne.s32.totalorder %s65, %s68
      %p74 = scmp.eq.s32.totalorder %s17, 0
      %p75 = por %p73, %p74
      %p76 = scmp.ne.s32.totalorder %s65, %s68
      %p77 = scmp.eq.s32.totalorder %s22, 3
      %p78 = por %p76, %p77
      %p79 = scmp.ne.s32.totalorder %s68, %s69
      %p80 = scmp.eq.s32.totalorder %s22, 0
      %p81 = por %p79, %p80
      %p82 = scmp.ne.s32.totalorder %s68, %s69
      %p83 = scmp.eq.s32.totalorder %s23, 3
      %p84 = por %p82, %p83
      %p86 = scmp.ne.s32.totalorder %s69, %s85
      %p87 = scmp.eq.s32.totalorder %s23, 0
      %p88 = por %p86, %p87
      %s89 = ssub.s32 %s24, %s36
      %s90 = ssub.s32 %s25, %s32
      %s91 = sor.u32 %s89, %s90
      %p92 = scmp.eq.s32.totalorder %s91, 0
      %s94 = sadd.s32 %s93, 1
      %s95 = scalar_select %p92, %s93, %s94
      %p98 = pneg %p92
      %p99 = scmp.eq.s32.totalorder %s17, 3
      %p100 = por %p98, %p99
      %p101 = scmp.ne.s32.totalorder %s93, %s96
      %p102 = scmp.eq.s32.totalorder %s17, 0
      %p103 = por %p101, %p102
      %p104 = scmp.ne.s32.totalorder %s93, %s96
      %p105 = scmp.eq.s32.totalorder %s22, 3
      %p106 = por %p104, %p105
      %p107 = scmp.ne.s32.totalorder %s96, %s97
      %p108 = scmp.eq.s32.totalorder %s22, 0
      %p109 = por %p107, %p108
      %p110 = scmp.ne.s32.totalorder %s96, %s97
      %p111 = scmp.eq.s32.totalorder %s23, 3
      %p112 = por %p110, %p111
      %p114 = scmp.ne.s32.totalorder %s97, %s113
      %p115 = scmp.eq.s32.totalorder %s23, 0
      %p116 = por %p114, %p115
      %s117 = ssub.s32 %s24, %s36
      %p118 = scmp.eq.s32.totalorder %s117, 0
      %s120 = sadd.s32 %s119, 1
      %s121 = scalar_select %p118, %s119, %s120
      %p124 = pneg %p118
      %p125 = scmp.eq.s32.totalorder %s17, 3
      %p126 = por %p124, %p125
      %p127 = scmp.ne.s32.totalorder %s119, %s122
      %p128 = scmp.eq.s32.totalorder %s17, 0
      %p129 = por %p127, %p128
      %p130 = scmp.ne.s32.totalorder %s119, %s122
      %p131 = scmp.eq.s32.totalorder %s22, 3
      %p132 = por %p130, %p131
      %p133 = scmp.ne.s32.totalorder %s122, %s123
      %p134 = scmp.eq.s32.totalorder %s22, 0
      %p135 = por %p133, %p134
      %p136 = scmp.ne.s32.totalorder %s122, %s123
      %p137 = scmp.eq.s32.totalorder %s23, 3
      %p138 = por %p136, %p137
      %p140 = scmp.ne.s32.totalorder %s123, %s139
      %p141 = scmp.eq.s32.totalorder %s23, 0
      %p142 = por %p140, %p141
      %s143 = ssub.s32 %s24, %s36
      %p144 = scmp.eq.s32.totalorder %s143, 0
      %s146 = sadd.s32 %s145, 1
      %s147 = scalar_select %p144, %s145, %s146
      %p150 = pneg %p144
      %p151 = scmp.eq.s32.totalorder %s17, 3
      %p152 = por %p150, %p151
      %p153 = scmp.ne.s32.totalorder %s145, %s148
      %p154 = scmp.eq.s32.totalorder %s17, 0
      %p155 = por %p153, %p154
      %p156 = scmp.ne.s32.totalorder %s145, %s148
      %p157 = scmp.eq.s32.totalorder %s22, 3
      %p158 = por %p156, %p157
      %p159 = scmp.ne.s32.totalorder %s148, %s149
      %p160 = scmp.eq.s32.totalorder %s22, 0
      %p161 = por %p159, %p160
      %p162 = scmp.ne.s32.totalorder %s148, %s149
      %p163 = scmp.eq.s32.totalorder %s23, 3
      %p164 = por %p162, %p163
      %p166 = scmp.ne.s32.totalorder %s149, %s165
      %p167 = scmp.eq.s32.totalorder %s23, 0
      %p168 = por %p166, %p167
      %s169 = ssub.s32 %s24, %s36
      %p170 = scmp.eq.s32.totalorder %s169, 0
      %s172 = sadd.s32 %s171, 1
      %s173 = scalar_select %p170, %s171, %s172
      %p176 = pneg %p170
      %p177 = scmp.eq.s32.totalorder %s17, 3
      %p178 = por %p176, %p177
      %p179 = scmp.ne.s32.totalorder %s171, %s174
      %p180 = scmp.eq.s32.totalorder %s17, 0
      %p181 = por %p179, %p180
      %p182 = scmp.ne.s32.totalorder %s171, %s174
      %p183 = scmp.eq.s32.totalorder %s22, 3
      %p184 = por %p182, %p183
      %p185 = scmp.ne.s32.totalorder %s174, %s175
      %p186 = scmp.eq.s32.totalorder %s22, 0
      %p187 = por %p185, %p186
      %p188 = scmp.ne.s32.totalorder %s174, %s175
      %p189 = scmp.eq.s32.totalorder %s23, 3
      %p190 = por %p188, %p189
      %p192 = scmp.ne.s32.totalorder %s175, %s191
      %p193 = scmp.eq.s32.totalorder %s23, 0
      %p194 = por %p192, %p193
      %s195 = ssub.s32 %s24, %s36
      %p196 = scmp.eq.s32.totalorder %s195, 0
      %s198 = sadd.s32 %s197, 1
      %s199 = scalar_select %p196, %s197, %s198
      %p202 = pneg %p196
      %p203 = scmp.eq.s32.totalorder %s17, 3
      %p204 = por %p202, %p203
      %p205 = scmp.ne.s32.totalorder %s197, %s200
      %p206 = scmp.eq.s32.totalorder %s17, 0
      %p207 = por %p205, %p206
      %p208 = scmp.ne.s32.totalorder %s197, %s200
      %p209 = scmp.eq.s32.totalorder %s22, 3
      %p210 = por %p208, %p209
      %p211 = scmp.ne.s32.totalorder %s200, %s201
      %p212 = scmp.eq.s32.totalorder %s22, 0
      %p213 = por %p211, %p212
      %p214 = scmp.ne.s32.totalorder %s200, %s201
      %p215 = scmp.eq.s32.totalorder %s23, 3
      %p216 = por %p214, %p215
      %p218 = scmp.ne.s32.totalorder %s201, %s217
      %p219 = scmp.eq.s32.totalorder %s23, 0
      %p220 = por %p218, %p219
      %s221 = ssub.s32 %s24, %s36
      %p222 = scmp.eq.s32.totalorder %s221, 0
      %s224 = sadd.s32 %s223, 1
      %s225 = scalar_select %p222, %s223, %s224
      %p228 = pneg %p222
      %p229 = scmp.eq.s32.totalorder %s17, 3
      %p230 = por %p228, %p229
      %p231 = scmp.ne.s32.totalorder %s223, %s226
      %p232 = scmp.eq.s32.totalorder %s17, 0
      %p233 = por %p231, %p232
      %p234 = scmp.ne.s32.totalorder %s223, %s226
      %p235 = scmp.eq.s32.totalorder %s22, 3
      %p236 = por %p234, %p235
      %p237 = scmp.ne.s32.totalorder %s226, %s227
      %p238 = scmp.eq.s32.totalorder %s22, 0
      %p239 = por %p237, %p238
      %p240 = scmp.ne.s32.totalorder %s226, %s227
      %p241 = scmp.eq.s32.totalorder %s23, 3
      %p242 = por %p240, %p241
      %p244 = scmp.ne.s32.totalorder %s227, %s243
      %p245 = scmp.eq.s32.totalorder %s23, 0
      %p246 = por %p244, %p245
      %s248 = sadd.s32 %s247, 1
      %p251 = scmp.eq.s32.totalorder %s17, 3
      %p252 = scmp.ne.s32.totalorder %s247, %s249
      %p253 = scmp.eq.s32.totalorder %s17, 0
      %p254 = por %p252, %p253
      %p255 = scmp.ne.s32.totalorder %s247, %s249
      %p256 = scmp.eq.s32.totalorder %s22, 3
      %p257 = por %p255, %p256
      %p258 = scmp.ne.s32.totalorder %s249, %s250
      %p259 = scmp.eq.s32.totalorder %s22, 0
      %p260 = por %p258, %p259
      %p261 = scmp.ne.s32.totalorder %s249, %s250
      %p262 = scmp.eq.s32.totalorder %s23, 3
      %p263 = por %p261, %p262
      %p265 = scmp.ne.s32.totalorder %s250, %s264
      %p266 = scmp.eq.s32.totalorder %s23, 0
      %p267 = por %p265, %p266
      %s269 = sadd.s32 %s268, 1
      %p272 = scmp.eq.s32.totalorder %s17, 3
      %p273 = scmp.ne.s32.totalorder %s268, %s270
      %p274 = scmp.eq.s32.totalorder %s17, 0
      %p275 = por %p273, %p274
      %p276 = scmp.ne.s32.totalorder %s268, %s270
      %p277 = scmp.eq.s32.totalorder %s22, 3
      %p278 = por %p276, %p277
      %p279 = scmp.ne.s32.totalorder %s270, %s271
      %p280 = scmp.eq.s32.totalorder %s22, 0
      %p281 = por %p279, %p280
      %p282 = scmp.ne.s32.totalorder %s270, %s271
      %p283 = scmp.eq.s32.totalorder %s23, 3
      %p284 = por %p282, %p283
      %p286 = scmp.ne.s32.totalorder %s271, %s285
      %p287 = scmp.eq.s32.totalorder %s23, 0
      %p288 = por %p286, %p287
      %p289 = scmp.le.s32.totalorder 1, %s17
      %p290 = scmp.lt.s32.totalorder %s17, 5
      %p291 = pnand %p289, %p290
      %p292 = pneg %p291
      // Predicated region
      $region9: #{tpu_custom_call.1} parent=5 // pred_check
        _
      $region10: #{tpu_custom_call.1} parent=5 // pred_check_branch
        %294 = sbr.rel (%p291) target = $region12
      $region11: #{tpu_custom_call.1} parent=5 // pred_region
        %s295 = ssub.s32 %s17, 1
        // Predicated region
        $region13: #{tpu_custom_call.1} parent=11 // pred_check
          %p296 = pneg %p260
        $region14: #{tpu_custom_call.1} parent=11 // pred_check_branch
          %298 = sbr.rel (%p296) target = $region16
        $region15: #{tpu_custom_call.1} parent=11 // pred_region
          _
        $region16: #{tpu_custom_call.1} parent=11 // pred_fallthru
          _
      $region12: #{tpu_custom_call.1} parent=5 // pred_fallthru
        _
      %p299 = scmp.lt.s32.totalorder %s17, 4
      // Predicated region
      $region17: #{tpu_custom_call.1} parent=5 // pred_check
        %p300 = pneg %p299
      $region18: #{tpu_custom_call.1} parent=5 // pred_check_branch
        %302 = sbr.rel (%p300) target = $region20
      $region19: #{tpu_custom_call.1} parent=5 // pred_region
        // Predicated region
        $region21: #{tpu_custom_call.1} parent=19 // pred_check
          %p303 = pneg %p49
        $region22: #{tpu_custom_call.1} parent=19 // pred_check_branch
          %305 = sbr.rel (%p303) target = $region24
        $region23: #{tpu_custom_call.1} parent=19 // pred_region
          %p306 = scmp.lt.s32.totalorder %s24, 1
          %s307 = scalar_select %p306, %s24, 1
          %s308 = smul.addr %s307, 8
          %s309 = scalar_lea.vmem %s0, %s308
        $region24: #{tpu_custom_call.1} parent=19 // pred_fallthru
          _
        // Predicated region
        $region25: #{tpu_custom_call.1} parent=19 // pred_check
          %p310 = pneg %p75
        $region26: #{tpu_custom_call.1} parent=19 // pred_check_branch
          %312 = sbr.rel (%p310) target = $region28
        $region27: #{tpu_custom_call.1} parent=19 // pred_region
          %p313 = scmp.lt.s32.totalorder %s24, 1
          %s314 = scalar_select %p313, %s24, 1
          %s315 = smul.addr %s314, 8
          %s316 = scalar_lea.vmem %s1, %s315
        $region28: #{tpu_custom_call.1} parent=19 // pred_fallthru
          _
        // Predicated region
        $region29: #{tpu_custom_call.1} parent=19 // pred_check
          %p317 = pneg %p103
        $region30: #{tpu_custom_call.1} parent=19 // pred_check_branch
          %319 = sbr.rel (%p317) target = $region32
        $region31: #{tpu_custom_call.1} parent=19 // pred_region
          %p320 = scmp.lt.s32.totalorder %s24, 1
          %s321 = scalar_select %p320, %s24, 1
          %p322 = scmp.lt.s32.totalorder %s25, 1
          %s323 = scalar_select %p322, %s25, 1
          %s324 = smul.addr %s321, 2
          %s325 = sadd.s32 %s323, %s324
          %s326 = smul.addr %s325, 8
          %s327 = scalar_lea.vmem %s2, %s326
        $region32: #{tpu_custom_call.1} parent=19 // pred_fallthru
          _
        // Predicated region
        $region33: #{tpu_custom_call.1} parent=19 // pred_check
          %p328 = pneg %p129
        $region34: #{tpu_custom_call.1} parent=19 // pred_check_branch
          %330 = sbr.rel (%p328) target = $region36
        $region35: #{tpu_custom_call.1} parent=19 // pred_region
          %p331 = scmp.lt.s32.totalorder %s24, 1
          %s332 = scalar_select %p331, %s24, 1
          %s333 = smul.addr %s332, 8
          %s334 = scalar_lea.vmem %s3, %s333
        $region36: #{tpu_custom_call.1} parent=19 // pred_fallthru
          _
        // Predicated region
        $region37: #{tpu_custom_call.1} parent=19 // pred_check
          %p335 = pneg %p155
        $region38: #{tpu_custom_call.1} parent=19 // pred_check_branch
          %337 = sbr.rel (%p335) target = $region40
        $region39: #{tpu_custom_call.1} parent=19 // pred_region
          %p338 = scmp.lt.s32.totalorder %s24, 1
          %s339 = scalar_select %p338, %s24, 1
          %s340 = smul.addr %s339, 8
          %s341 = scalar_lea.vmem %s4, %s340
        $region40: #{tpu_custom_call.1} parent=19 // pred_fallthru
          _
        // Predicated region
        $region41: #{tpu_custom_call.1} parent=19 // pred_check
          %p342 = pneg %p181
        $region42: #{tpu_custom_call.1} parent=19 // pred_check_branch
          %344 = sbr.rel (%p342) target = $region44
        $region43: #{tpu_custom_call.1} parent=19 // pred_region
          %p345 = scmp.lt.s32.totalorder %s24, 1
          %s346 = scalar_select %p345, %s24, 1
          %s347 = smul.addr %s346, 8
          %s348 = scalar_lea.vmem %s5, %s347
        $region44: #{tpu_custom_call.1} parent=19 // pred_fallthru
          _
        // Predicated region
        $region45: #{tpu_custom_call.1} parent=19 // pred_check
          %p349 = pneg %p207
        $region46: #{tpu_custom_call.1} parent=19 // pred_check_branch
          %351 = sbr.rel (%p349) target = $region48
        $region47: #{tpu_custom_call.1} parent=19 // pred_region
          %p352 = scmp.lt.s32.totalorder %s24, 1
          %s353 = scalar_select %p352, %s24, 1
          %s354 = smul.addr %s353, 8
          %s355 = scalar_lea.vmem %s6, %s354
        $region48: #{tpu_custom_call.1} parent=19 // pred_fallthru
          _
        // Predicated region
        $region49: #{tpu_custom_call.1} parent=19 // pred_check
          %p356 = pneg %p233
        $region50: #{tpu_custom_call.1} parent=19 // pred_check_branch
          %358 = sbr.rel (%p356) target = $region52
        $region51: #{tpu_custom_call.1} parent=19 // pred_region
          %p359 = scmp.lt.s32.totalorder %s24, 1
          %s360 = scalar_select %p359, %s24, 1
          %s361 = smul.addr %s360, 8
          %s362 = scalar_lea.vmem %s7, %s361
        $region52: #{tpu_custom_call.1} parent=19 // pred_fallthru
          _
      $region20: #{tpu_custom_call.1} parent=5 // pred_fallthru
        _
      %p363 = scmp.le.s32.totalorder 1, %s17
      %p364 = scmp.lt.s32.totalorder %s17, 5
      %p365 = pnand %p363, %p364
      %p366 = pneg %p365
      // Predicated region
      $region53: #{tpu_custom_call.1} parent=5 // pred_check
        _
      $region54: #{tpu_custom_call.1} parent=5 // pred_check_branch
        %368 = sbr.rel (%p365) target = $region56
      $region55: #{tpu_custom_call.1} parent=5 // pred_region
        %s369 = ssub.s32 %s17, 1
        %p370 = scmp.lt.s32.totalorder %s26, 1
        %s371 = scalar_select %p370, %s26, 1
        %s372 = smul.addr %s371, 8
        %s373 = scalar_lea.vmem %s0, %s372
        %p374 = pneg %p55
        %p375 = pneg %p52
        %p376 = scmp.lt.s32.totalorder %s26, 1
        %s377 = scalar_select %p376, %s26, 1
        %s378 = smul.addr %s377, 8
        %s379 = scalar_lea.vmem %s1, %s378
        %p380 = pneg %p81
        %p381 = pneg %p78
        %p382 = scmp.lt.s32.totalorder %s26, 1
        %s383 = scalar_select %p382, %s26, 1
        %p384 = scmp.lt.s32.totalorder %s27, 1
        %s385 = scalar_select %p384, %s27, 1
        %s386 = smul.addr %s383, 2
        %s387 = sadd.s32 %s385, %s386
        %s388 = smul.addr %s387, 8
        %s389 = scalar_lea.vmem %s2, %s388
        %p390 = pneg %p109
        %p391 = pneg %p106
        %p392 = scmp.lt.s32.totalorder %s26, 1
        %s393 = scalar_select %p392, %s26, 1
        %s394 = smul.addr %s393, 8
        %s395 = scalar_lea.vmem %s3, %s394
        %p396 = pneg %p135
        %p397 = pneg %p132
        %p398 = scmp.lt.s32.totalorder %s26, 1
        %s399 = scalar_select %p398, %s26, 1
        %s400 = smul.addr %s399, 8
        %s401 = scalar_lea.vmem %s4, %s400
        %p402 = pneg %p161
        %p403 = pneg %p158
        %p404 = scmp.lt.s32.totalorder %s26, 1
        %s405 = scalar_select %p404, %s26, 1
        %s406 = smul.addr %s405, 8
        %s407 = scalar_lea.vmem %s5, %s406
        %p408 = pneg %p187
        %p409 = pneg %p184
        %p410 = scmp.lt.s32.totalorder %s26, 1
        %s411 = scalar_select %p410, %s26, 1
        %s412 = smul.addr %s411, 8
        %s413 = scalar_lea.vmem %s6, %s412
        %p414 = pneg %p213
        %p415 = pneg %p210
        %p416 = scmp.lt.s32.totalorder %s26, 1
        %s417 = scalar_select %p416, %s26, 1
        %s418 = smul.addr %s417, 8
        %s419 = scalar_lea.vmem %s7, %s418
        %p420 = pneg %p239
        %p421 = pneg %p236
        %p422 = pneg %p260
        %p423 = pneg %p257
        %p424 = pneg %p281
        %p425 = pneg %p278
        %p426 = scmp.lt.s32.totalorder %s26, 1
        %s427 = scalar_select %p426, %s26, 1
        %s428 = smul.addr %s427, 8
        %s429 = scalar_lea.vmem %s0, %s428
        %p430 = scmp.lt.s32.totalorder %s26, 1
        %s431 = scalar_select %p430, %s26, 1
        %s432 = smul.addr %s431, 8
        %s433 = scalar_lea.vmem %s1, %s432
        %p434 = scmp.lt.s32.totalorder %s26, 1
        %s435 = scalar_select %p434, %s26, 1
        %p436 = scmp.lt.s32.totalorder %s27, 1
        %s437 = scalar_select %p436, %s27, 1
        %s438 = smul.addr %s435, 2
        %s439 = sadd.s32 %s437, %s438
        %s440 = smul.addr %s439, 8
        %s441 = scalar_lea.vmem %s2, %s440
        %p442 = scmp.lt.s32.totalorder %s26, 1
        %s443 = scalar_select %p442, %s26, 1
        %s444 = smul.addr %s443, 8
        %s445 = scalar_lea.vmem %s3, %s444
        %p446 = scmp.lt.s32.totalorder %s26, 1
        %s447 = scalar_select %p446, %s26, 1
        %s448 = smul.addr %s447, 8
        %s449 = scalar_lea.vmem %s4, %s448
        %p450 = scmp.lt.s32.totalorder %s26, 1
        %s451 = scalar_select %p450, %s26, 1
        %s452 = smul.addr %s451, 8
        %s453 = scalar_lea.vmem %s5, %s452
        %p454 = scmp.lt.s32.totalorder %s26, 1
        %s455 = scalar_select %p454, %s26, 1
        %s456 = smul.addr %s455, 8
        %s457 = scalar_lea.vmem %s6, %s456
        %p458 = scmp.lt.s32.totalorder %s26, 1
        %s459 = scalar_select %p458, %s26, 1
        %s460 = smul.addr %s459, 8
        %s461 = scalar_lea.vmem %s7, %s460
        %p462 = scmp.eq.s32.totalorder %s26, 0
        %p463 = scmp.eq.s32.totalorder %s27, 0
        %p464 = pnand %p462, %p463
        %p465 = pneg %p464
        // Predicated region
        $region57: #{tpu_custom_call.1} parent=55 // pred_check
          _
        $region58: #{tpu_custom_call.1} parent=55 // pred_check_branch
          %467 = sbr.rel (%p464) target = $region60
        $region59: #{tpu_custom_call.1} parent=55 // pred_region
          %s468 = scalar_lea.smem [#allocation2], 0
          %469 = sst [smem:[%s468]] 0.0
          %s470 = scalar_lea.smem [#allocation2], 1
          %471 = sst [smem:[%s470]] 0.0
          %s472 = scalar_lea.smem [#allocation2], 2
          %473 = sst [smem:[%s472]] 0.0
          %s474 = scalar_lea.smem [#allocation2], 3
          %475 = sst [smem:[%s474]] 0.0
        $region60: #{tpu_custom_call.1} parent=55 // pred_fallthru
          _
        // Predicated region
        $region61: #{tpu_custom_call.1} parent=55 // pred_check
          %p476 = pneg %p463
        $region62: #{tpu_custom_call.1} parent=55 // pred_check_branch
          %478 = sbr.rel (%p476) target = $region64
        $region63: #{tpu_custom_call.1} parent=55 // pred_region
          %s479 = sld [smem:[#allocation2]]
          %v480 = vld [vmem:[%s429] sm:$0xff]
          %v481 = vld [vmem:[%s433] sm:$0xff]
          %v482 = vsub.f32 %v480, %v481
          %v483 = vmul.f32 %v482, %v482
          %vm484 = vcmask 31744
          %v485 = vsel %vm484, %v483, 0.0
          %486 = vadd.xlane.f32.xlu0 %v485
          %v487 = vpop.xlane.xlu0 %486
          %v488 = vrot.slane %v487, 4
          %v489 = vadd.f32 %v487, %v488
          %v490 = vrot.slane %v489, 2
          %v491 = vadd.f32 %v489, %v490
          %v492 = vrot.slane %v491, 1
          %v493 = vadd.f32 %v491, %v492
          %s494 = vtos %v493
          %s495 = sadd.f32 %s479, %s494
          %s496 = scalar_lea.smem [#allocation2], 0
          %497 = sst [smem:[%s496]] %s495
          %s498 = sld [smem:[#allocation2 + $0x1]]
          %v499 = vld [vmem:[%s449] sm:$0xff]
          %v500 = vld [vmem:[%s453] sm:$0xff]
          %v501 = vsub.f32 %v499, %v500
          %v502 = vmul.f32 %v501, %v501
          %vm503 = vcmask 261120
          %v504 = vsel %vm503, %v502, 0.0
          %505 = vadd.xlane.f32.xlu0 %v504
          %v506 = vpop.xlane.xlu0 %505
          %v507 = vrot.slane %v506, 4
          %v508 = vadd.f32 %v506, %v507
          %v509 = vrot.slane %v508, 2
          %v510 = vadd.f32 %v508, %v509
          %v511 = vrot.slane %v510, 1
          %v512 = vadd.f32 %v510, %v511
          %s513 = vtos %v512
          %s514 = sadd.f32 %s498, %s513
          %s515 = scalar_lea.smem [#allocation2], 1
          %516 = sst [smem:[%s515]] %s514
          %s517 = sld [smem:[#allocation2 + $0x2]]
          %v518 = vld [vmem:[%s457] sm:$0xff]
          %v519 = vld [vmem:[%s461] sm:$0xff]
          %v520 = vsub.f32 %v518, %v519
          %v521 = vmul.f32 %v520, %v520
          %vm522 = vcmask 7168
          %v523 = vsel %vm522, %v521, 0.0
          %524 = vadd.xlane.f32.xlu0 %v523
          %v525 = vpop.xlane.xlu0 %524
          %v526 = vrot.slane %v525, 4
          %v527 = vadd.f32 %v525, %v526
          %v528 = vrot.slane %v527, 2
          %v529 = vadd.f32 %v527, %v528
          %v530 = vrot.slane %v529, 1
          %v531 = vadd.f32 %v529, %v530
          %s532 = vtos %v531
          %s533 = sadd.f32 %s517, %s532
          %s534 = scalar_lea.smem [#allocation2], 2
          %535 = sst [smem:[%s534]] %s533
          %536 = vst.msk [vmem:[#allocation3] sm:$0xff] %vm522, -inf
          %537 = vst.msk [vmem:[#allocation4] sm:$0xff] %vm522, 0.0
          %538 = vst.msk [vmem:[#allocation5] sm:$0xff] %vm522, 0.0
        $region64: #{tpu_custom_call.1} parent=55 // pred_fallthru
          _
        %v539 = vld [vmem:[%s441] sm:$0xff]
        %v540 = vlaneseq
        %v541 = vand.u32 %v540, 127
        %s542 = smul.u32 %s27, 128
        %v543 = vstv %s542
        %v544 = vadd.s32 %v541, %v543
        %v545 = vld [vmem:[#allocation5] sm:$0xff]
        %v546 = vld [vmem:[%s445] sm:$0xff]
        %547 = vset.pattern.permute.xlu0 0
        %548 = vperm.xlu0 %547, %v546
        %v549 = vpop.permute.xlu0 %548
        %vm550 = vcmp.eq.s32.totalorder %v544, %v549
        %v551 = vsel %vm550, %v539, 0.0
        %552 = vadd.xlane.f32.xlu0 %v551
        %v553 = vpop.xlane.xlu0 %552
        %v554 = vadd.f32 %v545, %v553
        %vm555 = vcmask 7168
        %556 = vst.msk [vmem:[#allocation5] sm:$0xff] %vm555, %v554
        %v557 = vld [vmem:[#allocation3] sm:$0xff]
        %558 = vmax.xlane.f32.xlu0 %v539
        %v559 = vpop.xlane.xlu0 %558
        %v560 = vmax.f32 %v557, %v559
        %v561 = vld [vmem:[#allocation4] sm:$0xff]
        %v562 = vsub.f32 %v557, %v560
        %v563 = vmul.f32 %v562, 1.442695
        %v564 = vpow.pop %v563
        %v565 = vmul.f32 %v561, %v564
        %567 = vset.pattern.permute.xlu0 0
        %568 = vperm.xlu0 %567, %v560
        %v569 = vpop.permute.xlu0 %568
        %v571 = vsub.f32 %v539, %v569
        %v572 = vmul.f32 %v571, 1.442695
        %v573 = vpow.pop %v572
        %574 = vadd.xlane.f32.xlu0 %v573
        %v575 = vpop.xlane.xlu0 %574
        %v576 = vadd.f32 %v565, %v575
        %577 = vst.msk [vmem:[#allocation4] sm:$0xff] %vm555, %v576
        %578 = vst.msk [vmem:[#allocation3] sm:$0xff] %vm555, %v560
        %p579 = scmp.eq.s32.totalorder %s27, 1
        // Predicated region
        $region65: #{tpu_custom_call.1} parent=55 // pred_check
          %p580 = pneg %p579
        $region66: #{tpu_custom_call.1} parent=55 // pred_check_branch
          %582 = sbr.rel (%p580) target = $region68
        $region67: #{tpu_custom_call.1} parent=55 // pred_region
          %s583 = sld [smem:[#allocation2 + $0x3]]
          %v584 = vld [vmem:[#allocation3] sm:$0xff]
          %v585 = vld [vmem:[#allocation4] sm:$0xff]
          %v586 = vlog2.pop %v585
          %v587 = vmul.f32 %v586, 0.6931472
          %v588 = vadd.f32 %v584, %v587
          %v589 = vld [vmem:[#allocation5] sm:$0xff]
          %v590 = vsub.f32 %v588, %v589
          %v591 = vsel %vm555, %v590, 0.0
          %592 = vadd.xlane.f32.xlu0 %v591
          %v593 = vpop.xlane.xlu0 %592
          %v594 = vrot.slane %v593, 4
          %v595 = vadd.f32 %v593, %v594
          %v596 = vrot.slane %v595, 2
          %v597 = vadd.f32 %v595, %v596
          %v598 = vrot.slane %v597, 1
          %v599 = vadd.f32 %v597, %v598
          %s600 = vtos %v599
          %s601 = sadd.f32 %s583, %s600
          %s602 = scalar_lea.smem [#allocation2], 3
          %603 = sst [smem:[%s602]] %s601
        $region68: #{tpu_custom_call.1} parent=55 // pred_fallthru
          _
        %p604 = scmp.eq.s32.totalorder %s26, 1
        %p605 = pnand %p604, %p579
        %p606 = pneg %p605
        // Predicated region
        $region69: #{tpu_custom_call.1} parent=55 // pred_check
          _
        $region70: #{tpu_custom_call.1} parent=55 // pred_check_branch
          %608 = sbr.rel (%p605) target = $region72
        $region71: #{tpu_custom_call.1} parent=55 // pred_region
          %s609 = sld [smem:[#allocation2]]
          %s610 = smul.f32 %s609, 0.015625
          %s611 = sld [smem:[#allocation2 + $0x1]]
          %s612 = smul.f32 %s611, 0.001953125
          %s613 = sld [smem:[#allocation2 + $0x2]]
          %s614 = smul.f32 %s613, 0.0625
          %s615 = sld [smem:[#allocation2 + $0x3]]
          %s616 = smul.f32 %s615, 0.0625
          %s617 = sld [smem:[#allocation6]]
          %s618 = smul.f32 %s616, 0.5
          %s619 = sadd.f32 %s610, %s618
          %s620 = sadd.f32 %s619, %s614
          %s621 = sadd.f32 %s620, %s617
          %s622 = scalar_lea.smem [#allocation7], 0
          %623 = sst [smem:[%s622]] %s621
          %s624 = scalar_lea.smem [#allocation7], 1
          %625 = sst [smem:[%s624]] %s614
          %s626 = scalar_lea.smem [#allocation7], 2
          %627 = sst [smem:[%s626]] %s610
          %s628 = scalar_lea.smem [#allocation7], 3
          %629 = sst [smem:[%s628]] %s616
          %s630 = scalar_lea.smem [#allocation7], 4
          %631 = sst [smem:[%s630]] %s612
          %s632 = scalar_lea.smem [#allocation7], 5
          %633 = sst [smem:[%s632]] %s617
        $region72: #{tpu_custom_call.1} parent=55 // pred_fallthru
          _
        // Predicated region
        $region73: #{tpu_custom_call.1} parent=55 // pred_check
          %p634 = pneg %p278
        $region74: #{tpu_custom_call.1} parent=55 // pred_check_branch
          %636 = sbr.rel (%p634) target = $region76
        $region75: #{tpu_custom_call.1} parent=55 // pred_region
          %s638 = ssub.s32 16, 16
          %639 = vsyncadd [#allocation8], %s638
          %642 = dma.smem_to_hbm [#allocation7], 16, %s9, [#allocation8]
        $region76: #{tpu_custom_call.1} parent=55 // pred_fallthru
          _
        // Predicated region
        $region77: #{tpu_custom_call.1} parent=55 // pred_check
          %p643 = pneg %p278
        $region78: #{tpu_custom_call.1} parent=55 // pred_check_branch
          %645 = sbr.rel (%p643) target = $region80
        $region79: #{tpu_custom_call.1} parent=55 // pred_region
          %646 = dma.done [#allocation8], 16
        $region80: #{tpu_custom_call.1} parent=55 // pred_fallthru
          _
        %647 = sfence
      $region56: #{tpu_custom_call.1} parent=5 // pred_fallthru
        _
      %p648 = scmp.le.s32.totalorder 2, %s17
      // Predicated region
      $region81: #{tpu_custom_call.1} parent=5 // pred_check
        %p649 = pneg %p648
      $region82: #{tpu_custom_call.1} parent=5 // pred_check_branch
        %651 = sbr.rel (%p649) target = $region84
      $region83: #{tpu_custom_call.1} parent=5 // pred_region
        %s652 = ssub.s32 %s17, 2
      $region84: #{tpu_custom_call.1} parent=5 // pred_fallthru
        _
    $region6: #{tpu_custom_call.1} parent=1 // loop_footer
      %s21 = sadd.s32 1, %s17
    $region7: #{tpu_custom_call.1} parent=1 // loop_footer_branch
      %16 = sbr.rel target = $region3
    $region8: #{tpu_custom_call.1} parent=1 // loop_exit
      _
    %653 = vsyncpa [#allocation8], 1
    %s654 = scalar_lea.sflag [#allocation8], 1
    %655 = vsyncpa %s654, 1

</llo_original>
